<compile_context>
chip_gen: v6e
topology: v6e:2x2x1
jax: 0.10.0
libtpu: 0.0.40
codegen_flags: <defaults>
</compile_context>

<pallas_src>
import functools

import jax
import jax.numpy as jnp
from jax.experimental import pallas as pl
from jax.experimental.pallas import tpu as pltpu

N_OUT = 3
N_OUT_PAD = 8  # final layer padded 3 -> 8 output columns (full-array last dim)


def mlp_kernel(x_ref,
               w1_ref, b1_ref,
               w2_ref, b2_ref,
               w3_ref, b3_ref,
               w4_ref, b4_ref,
               o_ref,
               *, compute_dtype):
    # x tile: (TB, 4). Weights/biases are whole-array blocks, VMEM-resident
    # across grid steps (constant index_map, ~25 KiB total).
    x = x_ref[...].astype(compute_dtype)

    h1 = jnp.dot(x, w1_ref[...], preferred_element_type=jnp.float32) + b1_ref[...]
    h1 = jnp.maximum(h1, 0.0).astype(compute_dtype)

    h2 = jnp.dot(h1, w2_ref[...], preferred_element_type=jnp.float32) + b2_ref[...]
    h2 = jnp.maximum(h2, 0.0).astype(compute_dtype)

    h3 = jnp.dot(h2, w3_ref[...], preferred_element_type=jnp.float32) + b3_ref[...]
    h3 = jnp.maximum(h3, 0.0).astype(compute_dtype)

    out = jnp.dot(h3, w4_ref[...], preferred_element_type=jnp.float32) + b4_ref[...]
    o_ref[...] = out.astype(o_ref.dtype)  # (TB, 8) store


def _round_up(n, m):
    return ((n + m - 1) // m) * m


def prepare_params(params, *, use_bf16=False):
    """One-time parameter prep (hoisted out of the per-call forward path):
    pad the last layer 3 -> 8 output columns and cast matmul weights to the
    MXU-input dtype. Biases stay f32 (added to the f32 accumulator)."""
    compute_dtype = jnp.bfloat16 if use_bf16 else jnp.float32
    w4 = jnp.pad(params["w4"], ((0, 0), (0, N_OUT_PAD - N_OUT)))
    b4 = jnp.pad(params["b4"], ((0, 0), (0, N_OUT_PAD - N_OUT)))

    def wcast(w):
        return w.astype(compute_dtype)

    weights = (wcast(params["w1"]), params["b1"],
               wcast(params["w2"]), params["b2"],
               wcast(params["w3"]), params["b3"],
               wcast(w4), b4)
    return weights, compute_dtype


def mymodel_forward(x, prepped, *, tile_b=4096):
    """x: (B, 4) float32. prepped: output of prepare_params(). Returns (B, 3)."""
    weights, compute_dtype = prepped
    B = x.shape[0]

    # Batch tiling:
    #  * round everything to multiples of 8 (sublane constraint),
    #  * large default tile amortizes per-step overhead (~12 MiB/step budget
    #    at tb=4096 incl. double buffering -- well under the 32 MiB scoped
    #    VMEM default on all generations),
    #  * cap the tile so a 'parallel' batch axis has >= 2 steps when the
    #    batch is big enough (v7x has 2 TensorCores per chip).
    b8 = _round_up(max(B, 1), 8)
    tb = _round_up(min(tile_b, b8), 8)
    if b8 >= 16 and tb >= b8:
        tb = _round_up((b8 + 1) // 2, 8)
    b_pad = _round_up(b8, tb)

    if x.dtype != compute_dtype:
        x = x.astype(compute_dtype)  # bf16 path: halve the input HBM read
    if b_pad != B:
        x = jnp.pad(x, ((0, b_pad - B), (0, 0)))

    # Weights/biases: full-array blocks with constant index_map -> resident
    # in VMEM across grid steps (no per-step re-DMA).
    def const_spec(arr):
        return pl.BlockSpec(arr.shape, lambda i: (0, 0))

    in_specs = [pl.BlockSpec((tb, 4), lambda i: (i, 0))]
    in_specs += [const_spec(w) for w in weights]

    out = pl.pallas_call(
        functools.partial(mlp_kernel, compute_dtype=compute_dtype),
        out_shape=jax.ShapeDtypeStruct((b_pad, N_OUT_PAD), jnp.float32),
        grid=(b_pad // tb,),
        in_specs=in_specs,
        out_specs=pl.BlockSpec((tb, N_OUT_PAD), lambda i: (i, 0)),
        compiler_params=pltpu.CompilerParams(
            dimension_semantics=("parallel",)),
    )(x, *weights)

    return out[:B, :N_OUT]


def init_params(key):
    """Deterministic init mimicking torch.nn.Linear defaults:
    U(-1/sqrt(fan_in), 1/sqrt(fan_in)) for both weight and bias."""
    dims = [(4, 128), (128, 64), (64, 8), (8, 3)]
    params = {}
    for i, (fin, fout) in enumerate(dims, start=1):
        key, kw, kb = jax.random.split(key, 3)
        bound = 1.0 / (fin ** 0.5)
        params[f"w{i}"] = jax.random.uniform(
            kw, (fin, fout), jnp.float32, minval=-bound, maxval=bound)
        params[f"b{i}"] = jax.random.uniform(
            kb, (1, fout), jnp.float32, minval=-bound, maxval=bound)
    return params


def reference_forward(x, params):
    h = x
    for i in range(1, 4):
        h = jnp.maximum(h @ params[f"w{i}"] + params[f"b{i}"], 0.0)
    return h @ params["w4"] + params["b4"]


if __name__ == "__main__":
    key = jax.random.PRNGKey(0)
    key, kx = jax.random.split(key)

    B = 8  # small batch of iris-like rows, 4 features each
    x = jax.random.normal(kx, (B, 4), jnp.float32)
    params = init_params(key)
    ref = reference_forward(x, params)

    # f32 MXU-input path (exact vs. reference).
    prepped_f32 = prepare_params(params, use_bf16=False)
    out = jax.block_until_ready(mymodel_forward(x, prepped_f32))
    assert out.shape == (B, N_OUT)
    assert jnp.allclose(out, ref, atol=1e-5, rtol=1e-5), "f32 mismatch vs reference"

    # bf16 MXU-input path (v6e/v7x fast path), f32 accumulation -> looser tol.
    prepped_bf16 = prepare_params(params, use_bf16=True)
    out_bf16 = jax.block_until_ready(mymodel_forward(x, prepped_bf16))
    assert out_bf16.shape == (B, N_OUT)
    assert jnp.allclose(out_bf16, ref, atol=3e-2, rtol=3e-2), "bf16 mismatch vs reference"

    # Non-multiple-of-8 batch -> exercises batch padding and the >=2-step
    # 'parallel' grid path (v7x megacore sharding).
    B2 = 30
    x2 = jax.random.normal(jax.random.PRNGKey(1), (B2, 4), jnp.float32)
    ref2 = reference_forward(x2, params)
    out2 = jax.block_until_ready(mymodel_forward(x2, prepped_f32))
    assert out2.shape == (B2, N_OUT)
    assert jnp.allclose(out2, ref2, atol=1e-5, rtol=1e-5), "padded-batch mismatch"

    print("KERNEL_OK")
</pallas_src>

<mosaic_0001>
module attributes {stable_mosaic.version = 11 : i64} {
  func.func @mlp_kernel(%arg0: i32, %arg1: memref<8x4xf32, #tpu.memory_space<vmem>>, %arg2: memref<4x128xf32, #tpu.memory_space<vmem>>, %arg3: memref<1x128xf32, #tpu.memory_space<vmem>>, %arg4: memref<128x64xf32, #tpu.memory_space<vmem>>, %arg5: memref<1x64xf32, #tpu.memory_space<vmem>>, %arg6: memref<64x8xf32, #tpu.memory_space<vmem>>, %arg7: memref<1x8xf32, #tpu.memory_space<vmem>>, %arg8: memref<8x8xf32, #tpu.memory_space<vmem>>, %arg9: memref<1x8xf32, #tpu.memory_space<vmem>>, %arg10: memref<8x8xf32, #tpu.memory_space<vmem>>) attributes {dimension_semantics = [#tpu.dimension_semantics<parallel>], iteration_bounds = array<i64: 1>, scalar_prefetch = 0 : i64, scratch_operands = 0 : i64, tpu.core_type = #tpu.core_type<tc>, window_params = [{transform_indices = @transform_0, window_bounds = array<i64: 8, 4>}, {pipeline_mode = #tpu.pipeline_mode<synchronous>, transform_indices = @transform_1, window_bounds = array<i64: 4, 128>}, {pipeline_mode = #tpu.pipeline_mode<synchronous>, transform_indices = @transform_2, window_bounds = array<i64: 1, 128>}, {pipeline_mode = #tpu.pipeline_mode<synchronous>, transform_indices = @transform_3, window_bounds = array<i64: 128, 64>}, {pipeline_mode = #tpu.pipeline_mode<synchronous>, transform_indices = @transform_4, window_bounds = array<i64: 1, 64>}, {pipeline_mode = #tpu.pipeline_mode<synchronous>, transform_indices = @transform_5, window_bounds = array<i64: 64, 8>}, {pipeline_mode = #tpu.pipeline_mode<synchronous>, transform_indices = @transform_6, window_bounds = array<i64: 1, 8>}, {pipeline_mode = #tpu.pipeline_mode<synchronous>, transform_indices = @transform_7, window_bounds = array<i64: 8, 8>}, {pipeline_mode = #tpu.pipeline_mode<synchronous>, transform_indices = @transform_8, window_bounds = array<i64: 1, 8>}, {transform_indices = @transform_9, window_bounds = array<i64: 8, 8>}]} {
    %c0 = arith.constant 0 : index
    %c0_0 = arith.constant 0 : index
    %0 = vector.load %arg1[%c0, %c0_0] : memref<8x4xf32, #tpu.memory_space<vmem>>, vector<8x4xf32>
    %c0_1 = arith.constant 0 : index
    %c0_2 = arith.constant 0 : index
    %1 = vector.load %arg2[%c0_1, %c0_2] : memref<4x128xf32, #tpu.memory_space<vmem>>, vector<4x128xf32>
    %cst = arith.constant dense<0.000000e+00> : vector<8x128xf32>
    %2 = tpu.matmul %0, %1, %cst {dimension_numbers = #tpu.dot_dimension_numbers<[1], [0], [0], [1], [0, 0, 1, 1], [], []>} : vector<8x4xf32>, vector<4x128xf32>, vector<8x128xf32> -> vector<8x128xf32>
    %c0_3 = arith.constant 0 : index
    %c0_4 = arith.constant 0 : index
    %3 = vector.load %arg3[%c0_3, %c0_4] : memref<1x128xf32, #tpu.memory_space<vmem>>, vector<1x128xf32>
    %4 = vector.broadcast %3 : vector<1x128xf32> to vector<8x128xf32>
    %5 = arith.addf %2, %4 : vector<8x128xf32>
    %cst_5 = arith.constant 0.000000e+00 : f32
    %6 = vector.broadcast %cst_5 : f32 to vector<8x128xf32>
    %7 = arith.maximumf %5, %6 : vector<8x128xf32>
    %c0_6 = arith.constant 0 : index
    %c0_7 = arith.constant 0 : index
    %8 = vector.load %arg4[%c0_6, %c0_7] : memref<128x64xf32, #tpu.memory_space<vmem>>, vector<128x64xf32>
    %cst_8 = arith.constant dense<0.000000e+00> : vector<8x64xf32>
    %9 = tpu.matmul %7, %8, %cst_8 {dimension_numbers = #tpu.dot_dimension_numbers<[1], [0], [0], [1], [0, 0, 1, 1], [], []>} : vector<8x128xf32>, vector<128x64xf32>, vector<8x64xf32> -> vector<8x64xf32>
    %c0_9 = arith.constant 0 : index
    %c0_10 = arith.constant 0 : index
    %10 = vector.load %arg5[%c0_9, %c0_10] : memref<1x64xf32, #tpu.memory_space<vmem>>, vector<1x64xf32>
    %11 = vector.broadcast %10 : vector<1x64xf32> to vector<8x64xf32>
    %12 = arith.addf %9, %11 : vector<8x64xf32>
    %cst_11 = arith.constant 0.000000e+00 : f32
    %13 = vector.broadcast %cst_11 : f32 to vector<8x64xf32>
    %14 = arith.maximumf %12, %13 : vector<8x64xf32>
    %c0_12 = arith.constant 0 : index
    %c0_13 = arith.constant 0 : index
    %15 = vector.load %arg6[%c0_12, %c0_13] : memref<64x8xf32, #tpu.memory_space<vmem>>, vector<64x8xf32>
    %cst_14 = arith.constant dense<0.000000e+00> : vector<8x8xf32>
    %16 = tpu.matmul %14, %15, %cst_14 {dimension_numbers = #tpu.dot_dimension_numbers<[1], [0], [0], [1], [0, 0, 1, 1], [], []>} : vector<8x64xf32>, vector<64x8xf32>, vector<8x8xf32> -> vector<8x8xf32>
    %c0_15 = arith.constant 0 : index
    %c0_16 = arith.constant 0 : index
    %17 = vector.load %arg7[%c0_15, %c0_16] : memref<1x8xf32, #tpu.memory_space<vmem>>, vector<1x8xf32>
    %18 = vector.broadcast %17 : vector<1x8xf32> to vector<8x8xf32>
    %19 = arith.addf %16, %18 : vector<8x8xf32>
    %cst_17 = arith.constant 0.000000e+00 : f32
    %20 = vector.broadcast %cst_17 : f32 to vector<8x8xf32>
    %21 = arith.maximumf %19, %20 : vector<8x8xf32>
    %c0_18 = arith.constant 0 : index
    %c0_19 = arith.constant 0 : index
    %22 = vector.load %arg8[%c0_18, %c0_19] : memref<8x8xf32, #tpu.memory_space<vmem>>, vector<8x8xf32>
    %cst_20 = arith.constant dense<0.000000e+00> : vector<8x8xf32>
    %23 = tpu.matmul %21, %22, %cst_20 {dimension_numbers = #tpu.dot_dimension_numbers<[1], [0], [0], [1], [0, 0, 1, 1], [], []>} : vector<8x8xf32>, vector<8x8xf32>, vector<8x8xf32> -> vector<8x8xf32>
    %c0_21 = arith.constant 0 : index
    %c0_22 = arith.constant 0 : index
    %24 = vector.load %arg9[%c0_21, %c0_22] : memref<1x8xf32, #tpu.memory_space<vmem>>, vector<1x8xf32>
    %25 = vector.broadcast %24 : vector<1x8xf32> to vector<8x8xf32>
    %26 = arith.addf %23, %25 : vector<8x8xf32>
    %c0_23 = arith.constant 0 : index
    %c0_24 = arith.constant 0 : index
    %27 = vector.load %arg10[%c0_23, %c0_24] : memref<8x8xf32, #tpu.memory_space<vmem>>, vector<8x8xf32>
    tpu.vector_store %arg10[%c0_23, %c0_24], %26 {strides = array<i32>} : memref<8x8xf32, #tpu.memory_space<vmem>>, vector<8x8xf32>,
    return
  }
  func.func @transform_0(%arg0: i32) -> (i32, i32) {
    %c0_i32 = arith.constant 0 : i32
    %c0_i32_0 = arith.constant 0 : i32
    return %arg0, %c0_i32 : i32, i32
  }
  func.func @transform_1(%arg0: i32) -> (i32, i32) {
    %c0_i32 = arith.constant 0 : i32
    %c0_i32_0 = arith.constant 0 : i32
    %c0_i32_1 = arith.constant 0 : i32
    return %c0_i32, %c0_i32_0 : i32, i32
  }
  func.func @transform_2(%arg0: i32) -> (i32, i32) {
    %c0_i32 = arith.constant 0 : i32
    %c0_i32_0 = arith.constant 0 : i32
    %c0_i32_1 = arith.constant 0 : i32
    return %c0_i32, %c0_i32_0 : i32, i32
  }
  func.func @transform_3(%arg0: i32) -> (i32, i32) {
    %c0_i32 = arith.constant 0 : i32
    %c0_i32_0 = arith.constant 0 : i32
    %c0_i32_1 = arith.constant 0 : i32
    return %c0_i32, %c0_i32_0 : i32, i32
  }
  func.func @transform_4(%arg0: i32) -> (i32, i32) {
    %c0_i32 = arith.constant 0 : i32
    %c0_i32_0 = arith.constant 0 : i32
    %c0_i32_1 = arith.constant 0 : i32
    return %c0_i32, %c0_i32_0 : i32, i32
  }
  func.func @transform_5(%arg0: i32) -> (i32, i32) {
    %c0_i32 = arith.constant 0 : i32
    %c0_i32_0 = arith.constant 0 : i32
    %c0_i32_1 = arith.constant 0 : i32
    return %c0_i32, %c0_i32_0 : i32, i32
  }
  func.func @transform_6(%arg0: i32) -> (i32, i32) {
    %c0_i32 = arith.constant 0 : i32
    %c0_i32_0 = arith.constant 0 : i32
    %c0_i32_1 = arith.constant 0 : i32
    return %c0_i32, %c0_i32_0 : i32, i32
  }
  func.func @transform_7(%arg0: i32) -> (i32, i32) {
    %c0_i32 = arith.constant 0 : i32
    %c0_i32_0 = arith.constant 0 : i32
    %c0_i32_1 = arith.constant 0 : i32
    return %c0_i32, %c0_i32_0 : i32, i32
  }
  func.func @transform_8(%arg0: i32) -> (i32, i32) {
    %c0_i32 = arith.constant 0 : i32
    %c0_i32_0 = arith.constant 0 : i32
    %c0_i32_1 = arith.constant 0 : i32
    return %c0_i32, %c0_i32_0 : i32, i32
  }
  func.func @transform_9(%arg0: i32) -> (i32, i32) {
    %c0_i32 = arith.constant 0 : i32
    %c0_i32_0 = arith.constant 0 : i32
    return %arg0, %c0_i32 : i32, i32
  }
}

</mosaic_0001>

<llo_original>
// kernel: tpu_custom_call.1
$region0: #{tpu_custom_call.1}
  #allocation0 [shape = 'u32[]', space=smem, size = 0x4, offset = 0x4, fixed_abs, tag = 'smem constant byte address 0x4 - core index']
  #allocation1 [shape = 'u32[144,128]{1,0:T(1,128)}', space=vmem, size = 0x12000, scoped, tag = 'internal scratch']
  %s0 = inlined_call_operand.vmem [shape: f32[8,4], index: 0, kind: input, shape index: {}]
  %s1 = inlined_call_operand.vmem [shape: f32[4,128], index: 1, kind: input, shape index: {}]
  %s2 = inlined_call_operand.vmem [shape: f32[1,128], index: 2, kind: input, shape index: {}]
  %s3 = inlined_call_operand.vmem [shape: f32[128,64], index: 3, kind: input, shape index: {}]
  %s4 = inlined_call_operand.vmem [shape: f32[1,64], index: 4, kind: input, shape index: {}]
  %s5 = inlined_call_operand.vmem [shape: f32[64,8], index: 5, kind: input, shape index: {}]
  %s6 = inlined_call_operand.vmem [shape: f32[1,8], index: 6, kind: input, shape index: {}]
  %s7 = inlined_call_operand.vmem [shape: f32[8,8], index: 7, kind: input, shape index: {}]
  %s8 = inlined_call_operand.vmem [shape: f32[1,8], index: 8, kind: input, shape index: {}]
  %s9 = inlined_call_operand.hbm [shape: f32[8,8], index: 9, kind: output, shape index: {}]
  %s10 = sld [smem:[#allocation0]]
  $region46: #{tpu_custom_call.1} parent=0
    _
  %s12 = ssub.s32 1, %s10
  %s13 = scalar_select 0, %s12, %s10
  $region1: #{tpu_custom_call.1} parent=0
    #allocation2 [shape = 'u8[4096]{0}', space=vmem, size = 0x1000, scoped, tag = 'output window, operand 0, single buffered']
    #allocation3 [shape = 's32[1]{0}', space=sflag, size = 0x4, scoped, tag = 'scoped memory for tpu_custom_call.1']
    %14 = vsyncpa [#allocation3], 0
    // Predicated region
    $region2: #{tpu_custom_call.1} parent=1 // pred_check
      _
    $region3: #{tpu_custom_call.1} parent=1 // pred_check_branch
      %16 = sbr.rel (0) target = $region5
    $region4: #{tpu_custom_call.1} parent=1 // pred_region
      _
    $region5: #{tpu_custom_call.1} parent=1 // pred_fallthru
      _
    // Predicated region
    $region6: #{tpu_custom_call.1} parent=1 // pred_check
      _
    $region7: #{tpu_custom_call.1} parent=1 // pred_check_branch
      %18 = sbr.rel (0) target = $region9
    $region8: #{tpu_custom_call.1} parent=1 // pred_region
      _
    $region9: #{tpu_custom_call.1} parent=1 // pred_fallthru
      _
    // Predicated region
    $region10: #{tpu_custom_call.1} parent=1 // pred_check
      _
    $region11: #{tpu_custom_call.1} parent=1 // pred_check_branch
      %20 = sbr.rel (0) target = $region13
    $region12: #{tpu_custom_call.1} parent=1 // pred_region
      _
    $region13: #{tpu_custom_call.1} parent=1 // pred_fallthru
      _
    // Predicated region
    $region14: #{tpu_custom_call.1} parent=1 // pred_check
      _
    $region15: #{tpu_custom_call.1} parent=1 // pred_check_branch
      %22 = sbr.rel (0) target = $region17
    $region16: #{tpu_custom_call.1} parent=1 // pred_region
      _
    $region17: #{tpu_custom_call.1} parent=1 // pred_fallthru
      _
    // Predicated region
    $region18: #{tpu_custom_call.1} parent=1 // pred_check
      _
    $region19: #{tpu_custom_call.1} parent=1 // pred_check_branch
      %24 = sbr.rel (0) target = $region21
    $region20: #{tpu_custom_call.1} parent=1 // pred_region
      _
    $region21: #{tpu_custom_call.1} parent=1 // pred_fallthru
      _
    // Predicated region
    $region22: #{tpu_custom_call.1} parent=1 // pred_check
      _
    $region23: #{tpu_custom_call.1} parent=1 // pred_check_branch
      %26 = sbr.rel (0) target = $region25
    $region24: #{tpu_custom_call.1} parent=1 // pred_region
      _
    $region25: #{tpu_custom_call.1} parent=1 // pred_fallthru
      _
    // Predicated region
    $region26: #{tpu_custom_call.1} parent=1 // pred_check
      _
    $region27: #{tpu_custom_call.1} parent=1 // pred_check_branch
      %28 = sbr.rel (0) target = $region29
    $region28: #{tpu_custom_call.1} parent=1 // pred_region
      _
    $region29: #{tpu_custom_call.1} parent=1 // pred_fallthru
      _
    // Predicated region
    $region30: #{tpu_custom_call.1} parent=1 // pred_check
      _
    $region31: #{tpu_custom_call.1} parent=1 // pred_check_branch
      %30 = sbr.rel (0) target = $region33
    $region32: #{tpu_custom_call.1} parent=1 // pred_region
      _
    $region33: #{tpu_custom_call.1} parent=1 // pred_fallthru
      _
    // Predicated region
    $region34: #{tpu_custom_call.1} parent=1 // pred_check
      _
    $region35: #{tpu_custom_call.1} parent=1 // pred_check_branch
      %32 = sbr.rel (0) target = $region37
    $region36: #{tpu_custom_call.1} parent=1 // pred_region
      _
    $region37: #{tpu_custom_call.1} parent=1 // pred_fallthru
      _
    %v33 = vld [vmem:[%s0] sm:$0xff]
    %v34 = vld [vmem:[%s1] sm:$0xf]
    %v35 = vld [vmem:[%s2] sm:$0x1]
    %v37 = vlaneseq
    %v38 = vshrl.u32 %v37, 7
    %v39 = vsub.s32 0, %v38
    %v40 = vrot.slane %v35, %v39
    %vm42 = vcmask 31744
    %v44 = vsel %vm42, %v33, 0
    %vm46 = vcmask 1043456
    %v48 = vsel %vm46, %v34, 0
    %50 = vmatprep.subr.mxu0 0.0
    %51 = vmatpush1.msra.mxu0 0.0
    %52 = vmatprep.subr.mxu0 0.0
    %53 = vmatpush1.msra.mxu0 0.0
    %54 = vmatprep.subr.mxu0 0.0
    %55 = vmatpush1.msra.mxu0 0.0
    %56 = vmatprep.subr.mxu0 0.0
    %57 = vmatpush1.msra.mxu0 0.0
    %58 = vmatprep.subr.mxu0 0.0
    %59 = vmatpush1.msra.mxu0 0.0
    %60 = vmatprep.subr.mxu0 0.0
    %61 = vmatpush1.msra.mxu0 0.0
    %62 = vmatprep.subr.mxu0 0.0
    %63 = vmatpush1.msra.mxu0 0.0
    %64 = vmatprep.subr.mxu0 0.0
    %65 = vmatpush1.msra.mxu0 0.0
    %66 = vmatprep.subr.mxu0 0.0
    %67 = vmatpush1.msra.mxu0 0.0
    %68 = vmatprep.subr.mxu0 0.0
    %69 = vmatpush1.msra.mxu0 0.0
    %70 = vmatprep.subr.mxu0 0.0
    %71 = vmatpush1.msra.mxu0 0.0
    %72 = vmatprep.subr.mxu0 0.0
    %73 = vmatpush1.msra.mxu0 0.0
    %74 = vmatprep.subr.mxu0 0.0
    %75 = vmatpush1.msra.mxu0 0.0
    %76 = vmatprep.subr.mxu0 0.0
    %77 = vmatpush1.msra.mxu0 0.0
    %78 = vmatprep.subr.mxu0 0.0
    %79 = vmatpush1.msra.mxu0 0.0
    %80 = vmatprep.subr.mxu0 0.0
    %81 = vmatpush1.msra.mxu0 %v48
    %82 = vmatprep.subr.mxu0 0.0
    %83 = vmatpush2.msra.mxu0 0.0
    %84 = vmatprep.subr.mxu0 0.0
    %85 = vmatpush2.msra.mxu0 0.0
    %86 = vmatprep.subr.mxu0 0.0
    %87 = vmatpush2.msra.mxu0 0.0
    %88 = vmatprep.subr.mxu0 0.0
    %89 = vmatpush2.msra.mxu0 0.0
    %90 = vmatprep.subr.mxu0 0.0
    %91 = vmatpush2.msra.mxu0 0.0
    %92 = vmatprep.subr.mxu0 0.0
    %93 = vmatpush2.msra.mxu0 0.0
    %94 = vmatprep.subr.mxu0 0.0
    %95 = vmatpush2.msra.mxu0 0.0
    %96 = vmatprep.subr.mxu0 0.0
    %97 = vmatpush2.msra.mxu0 0.0
    %98 = vmatprep.subr.mxu0 0.0
    %99 = vmatpush2.msra.mxu0 0.0
    %100 = vmatprep.subr.mxu0 0.0
    %101 = vmatpush2.msra.mxu0 0.0
    %102 = vmatprep.subr.mxu0 0.0
    %103 = vmatpush2.msra.mxu0 0.0
    %104 = vmatprep.subr.mxu0 0.0
    %105 = vmatpush2.msra.mxu0 0.0
    %106 = vmatprep.subr.mxu0 0.0
    %107 = vmatpush2.msra.mxu0 0.0
    %108 = vmatprep.subr.mxu0 0.0
    %109 = vmatpush2.msra.mxu0 0.0
    %110 = vmatprep.subr.mxu0 0.0
    %111 = vmatpush2.msra.mxu0 0.0
    %112 = vmatprep.subr.mxu0 0.0
    %113 = vmatpush2.msra.mxu0 0.0
    %114 = vmatprep.mubr.f32.mxu0 0.0
    %115 = vmatmul.mubr.f32.gmra.mxu0 %v44
    %v116 = vpop.f32.mrf.mxu0
    %v117 = vadd.f32 %v40, %v116
    %v118 = vpop.f32.mrf.mxu0
    %119 = vdwg.mxu0
    %v120 = vmax.f32 %v117, 0.0
    %v121 = vld [vmem:[%s3] sm:$0xff]
    %v122 = vld [vmem:[%s3 + $0x8] sm:$0xff]
    %v123 = vld [vmem:[%s3 + $0x10] sm:$0xff]
    %v124 = vld [vmem:[%s3 + $0x18] sm:$0xff]
    %v125 = vld [vmem:[%s3 + $0x20] sm:$0xff]
    %v126 = vld [vmem:[%s3 + $0x28] sm:$0xff]
    %v127 = vld [vmem:[%s3 + $0x30] sm:$0xff]
    %v128 = vld [vmem:[%s3 + $0x38] sm:$0xff]
    %v129 = vld [vmem:[%s3 + $0x40] sm:$0xff]
    %v130 = vld [vmem:[%s3 + $0x48] sm:$0xff]
    %v131 = vld [vmem:[%s3 + $0x50] sm:$0xff]
    %v132 = vld [vmem:[%s3 + $0x58] sm:$0xff]
    %v133 = vld [vmem:[%s3 + $0x60] sm:$0xff]
    %v134 = vld [vmem:[%s3 + $0x68] sm:$0xff]
    %v135 = vld [vmem:[%s3 + $0x70] sm:$0xff]
    %v136 = vld [vmem:[%s3 + $0x78] sm:$0xff]
    %v137 = vld [vmem:[%s4] sm:$0x1]
    %v139 = vlaneseq
    %v140 = vshrl.u32 %v139, 7
    %v141 = vsub.s32 0, %v140
    %v142 = vrot.slane %v137, %v141
    %144 = vmatprep.subr.mxu0 0.0
    %145 = vmatpush1.msra.mxu0 %v136
    %146 = vmatprep.subr.mxu0 0.0
    %147 = vmatpush1.msra.mxu0 %v135
    %148 = vmatprep.subr.mxu0 0.0
    %149 = vmatpush1.msra.mxu0 %v134
    %150 = vmatprep.subr.mxu0 0.0
    %151 = vmatpush1.msra.mxu0 %v133
    %152 = vmatprep.subr.mxu0 0.0
    %153 = vmatpush1.msra.mxu0 %v132
    %154 = vmatprep.subr.mxu0 0.0
    %155 = vmatpush1.msra.mxu0 %v131
    %156 = vmatprep.subr.mxu0 0.0
    %157 = vmatpush1.msra.mxu0 %v130
    %158 = vmatprep.subr.mxu0 0.0
    %159 = vmatpush1.msra.mxu0 %v129
    %160 = vmatprep.subr.mxu0 0.0
    %161 = vmatpush1.msra.mxu0 %v128
    %162 = vmatprep.subr.mxu0 0.0
    %163 = vmatpush1.msra.mxu0 %v127
    %164 = vmatprep.subr.mxu0 0.0
    %165 = vmatpush1.msra.mxu0 %v126
    %166 = vmatprep.subr.mxu0 0.0
    %167 = vmatpush1.msra.mxu0 %v125
    %168 = vmatprep.subr.mxu0 0.0
    %169 = vmatpush1.msra.mxu0 %v124
    %170 = vmatprep.subr.mxu0 0.0
    %171 = vmatpush1.msra.mxu0 %v123
    %172 = vmatprep.subr.mxu0 0.0
    %173 = vmatpush1.msra.mxu0 %v122
    %174 = vmatprep.subr.mxu0 0.0
    %175 = vmatpush1.msra.mxu0 %v121
    %176 = vmatprep.subr.mxu0 0.0
    %177 = vmatpush2.msra.mxu0 0.0
    %178 = vmatprep.subr.mxu0 0.0
    %179 = vmatpush2.msra.mxu0 0.0
    %180 = vmatprep.subr.mxu0 0.0
    %181 = vmatpush2.msra.mxu0 0.0
    %182 = vmatprep.subr.mxu0 0.0
    %183 = vmatpush2.msra.mxu0 0.0
    %184 = vmatprep.subr.mxu0 0.0
    %185 = vmatpush2.msra.mxu0 0.0
    %186 = vmatprep.subr.mxu0 0.0
    %187 = vmatpush2.msra.mxu0 0.0
    %188 = vmatprep.subr.mxu0 0.0
    %189 = vmatpush2.msra.mxu0 0.0
    %190 = vmatprep.subr.mxu0 0.0
    %191 = vmatpush2.msra.mxu0 0.0
    %192 = vmatprep.subr.mxu0 0.0
    %193 = vmatpush2.msra.mxu0 0.0
    %194 = vmatprep.subr.mxu0 0.0
    %195 = vmatpush2.msra.mxu0 0.0
    %196 = vmatprep.subr.mxu0 0.0
    %197 = vmatpush2.msra.mxu0 0.0
    %198 = vmatprep.subr.mxu0 0.0
    %199 = vmatpush2.msra.mxu0 0.0
    %200 = vmatprep.subr.mxu0 0.0
    %201 = vmatpush2.msra.mxu0 0.0
    %202 = vmatprep.subr.mxu0 0.0
    %203 = vmatpush2.msra.mxu0 0.0
    %204 = vmatprep.subr.mxu0 0.0
    %205 = vmatpush2.msra.mxu0 0.0
    %206 = vmatprep.subr.mxu0 0.0
    %207 = vmatpush2.msra.mxu0 0.0
    %208 = vmatprep.mubr.f32.mxu0 0.0
    %209 = vmatmul.mubr.f32.gmra.mxu0 %v120
    %v210 = vpop.f32.mrf.mxu0
    %v211 = vadd.f32 %v142, %v210
    %v212 = vpop.f32.mrf.mxu0
    %213 = vdwg.mxu0
    %v214 = vmax.f32 %v211, 0.0
    %v215 = vld [vmem:[%s5] sm:$0xff]
    %v216 = vld [vmem:[%s5 + $0x8] sm:$0xff]
    %v217 = vld [vmem:[%s5 + $0x10] sm:$0xff]
    %v218 = vld [vmem:[%s5 + $0x18] sm:$0xff]
    %v219 = vld [vmem:[%s5 + $0x20] sm:$0xff]
    %v220 = vld [vmem:[%s5 + $0x28] sm:$0xff]
    %v221 = vld [vmem:[%s5 + $0x30] sm:$0xff]
    %v222 = vld [vmem:[%s5 + $0x38] sm:$0xff]
    %v223 = vld [vmem:[%s6] sm:$0x1]
    %v225 = vlaneseq
    %v226 = vshrl.u32 %v225, 7
    %v227 = vsub.s32 0, %v226
    %v228 = vrot.slane %v223, %v227
    %vm230 = vcmask 523264
    %v232 = vsel %vm230, %v214, 0
    %234 = vmatprep.subr.mxu0 0.0
    %235 = vmatpush1.msra.mxu0 0.0
    %236 = vmatprep.subr.mxu0 0.0
    %237 = vmatpush1.msra.mxu0 0.0
    %238 = vmatprep.subr.mxu0 0.0
    %239 = vmatpush1.msra.mxu0 0.0
    %240 = vmatprep.subr.mxu0 0.0
    %241 = vmatpush1.msra.mxu0 0.0
    %242 = vmatprep.subr.mxu0 0.0
    %243 = vmatpush1.msra.mxu0 0.0
    %244 = vmatprep.subr.mxu0 0.0
    %245 = vmatpush1.msra.mxu0 0.0
    %246 = vmatprep.subr.mxu0 0.0
    %247 = vmatpush1.msra.mxu0 0.0
    %248 = vmatprep.subr.mxu0 0.0
    %249 = vmatpush1.msra.mxu0 0.0
    %250 = vmatprep.subr.mxu0 0.0
    %251 = vmatpush1.msra.mxu0 %v222
    %252 = vmatprep.subr.mxu0 0.0
    %253 = vmatpush1.msra.mxu0 %v221
    %254 = vmatprep.subr.mxu0 0.0
    %255 = vmatpush1.msra.mxu0 %v220
    %256 = vmatprep.subr.mxu0 0.0
    %257 = vmatpush1.msra.mxu0 %v219
    %258 = vmatprep.subr.mxu0 0.0
    %259 = vmatpush1.msra.mxu0 %v218
    %260 = vmatprep.subr.mxu0 0.0
    %261 = vmatpush1.msra.mxu0 %v217
    %262 = vmatprep.subr.mxu0 0.0
    %263 = vmatpush1.msra.mxu0 %v216
    %264 = vmatprep.subr.mxu0 0.0
    %265 = vmatpush1.msra.mxu0 %v215
    %266 = vmatprep.subr.mxu0 0.0
    %267 = vmatpush2.msra.mxu0 0.0
    %268 = vmatprep.subr.mxu0 0.0
    %269 = vmatpush2.msra.mxu0 0.0
    %270 = vmatprep.subr.mxu0 0.0
    %271 = vmatpush2.msra.mxu0 0.0
    %272 = vmatprep.subr.mxu0 0.0
    %273 = vmatpush2.msra.mxu0 0.0
    %274 = vmatprep.subr.mxu0 0.0
    %275 = vmatpush2.msra.mxu0 0.0
    %276 = vmatprep.subr.mxu0 0.0
    %277 = vmatpush2.msra.mxu0 0.0
    %278 = vmatprep.subr.mxu0 0.0
    %279 = vmatpush2.msra.mxu0 0.0
    %280 = vmatprep.subr.mxu0 0.0
    %281 = vmatpush2.msra.mxu0 0.0
    %282 = vmatprep.subr.mxu0 0.0
    %283 = vmatpush2.msra.mxu0 0.0
    %284 = vmatprep.subr.mxu0 0.0
    %285 = vmatpush2.msra.mxu0 0.0
    %286 = vmatprep.subr.mxu0 0.0
    %287 = vmatpush2.msra.mxu0 0.0
    %288 = vmatprep.subr.mxu0 0.0
    %289 = vmatpush2.msra.mxu0 0.0
    %290 = vmatprep.subr.mxu0 0.0
    %291 = vmatpush2.msra.mxu0 0.0
    %292 = vmatprep.subr.mxu0 0.0
    %293 = vmatpush2.msra.mxu0 0.0
    %294 = vmatprep.subr.mxu0 0.0
    %295 = vmatpush2.msra.mxu0 0.0
    %296 = vmatprep.subr.mxu0 0.0
    %297 = vmatpush2.msra.mxu0 0.0
    %298 = vmatprep.mubr.f32.mxu0 0.0
    %299 = vmatmul.mubr.f32.gmra.mxu0 %v232
    %v300 = vpop.f32.mrf.mxu0
    %v301 = vadd.f32 %v228, %v300
    %v302 = vpop.f32.mrf.mxu0
    %303 = vdwg.mxu0
    %v304 = vmax.f32 %v301, 0.0
    %v305 = vld [vmem:[%s7] sm:$0xff]
    %v306 = vld [vmem:[%s8] sm:$0x1]
    %v308 = vlaneseq
    %v309 = vshrl.u32 %v308, 7
    %v310 = vsub.s32 0, %v309
    %v311 = vrot.slane %v306, %v310
    %vm313 = vcmask 64512
    %v315 = vsel %vm313, %v304, 0
    %317 = vmatprep.subr.mxu0 0.0
    %318 = vmatpush1.msra.mxu0 0.0
    %319 = vmatprep.subr.mxu0 0.0
    %320 = vmatpush1.msra.mxu0 0.0
    %321 = vmatprep.subr.mxu0 0.0
    %322 = vmatpush1.msra.mxu0 0.0
    %323 = vmatprep.subr.mxu0 0.0
    %324 = vmatpush1.msra.mxu0 0.0
    %325 = vmatprep.subr.mxu0 0.0
    %326 = vmatpush1.msra.mxu0 0.0
    %327 = vmatprep.subr.mxu0 0.0
    %328 = vmatpush1.msra.mxu0 0.0
    %329 = vmatprep.subr.mxu0 0.0
    %330 = vmatpush1.msra.mxu0 0.0
    %331 = vmatprep.subr.mxu0 0.0
    %332 = vmatpush1.msra.mxu0 0.0
    %333 = vmatprep.subr.mxu0 0.0
    %334 = vmatpush1.msra.mxu0 0.0
    %335 = vmatprep.subr.mxu0 0.0
    %336 = vmatpush1.msra.mxu0 0.0
    %337 = vmatprep.subr.mxu0 0.0
    %338 = vmatpush1.msra.mxu0 0.0
    %339 = vmatprep.subr.mxu0 0.0
    %340 = vmatpush1.msra.mxu0 0.0
    %341 = vmatprep.subr.mxu0 0.0
    %342 = vmatpush1.msra.mxu0 0.0
    %343 = vmatprep.subr.mxu0 0.0
    %344 = vmatpush1.msra.mxu0 0.0
    %345 = vmatprep.subr.mxu0 0.0
    %346 = vmatpush1.msra.mxu0 0.0
    %347 = vmatprep.subr.mxu0 0.0
    %348 = vmatpush1.msra.mxu0 %v305
    %349 = vmatprep.subr.mxu0 0.0
    %350 = vmatpush2.msra.mxu0 0.0
    %351 = vmatprep.subr.mxu0 0.0
    %352 = vmatpush2.msra.mxu0 0.0
    %353 = vmatprep.subr.mxu0 0.0
    %354 = vmatpush2.msra.mxu0 0.0
    %355 = vmatprep.subr.mxu0 0.0
    %356 = vmatpush2.msra.mxu0 0.0
    %357 = vmatprep.subr.mxu0 0.0
    %358 = vmatpush2.msra.mxu0 0.0
    %359 = vmatprep.subr.mxu0 0.0
    %360 = vmatpush2.msra.mxu0 0.0
    %361 = vmatprep.subr.mxu0 0.0
    %362 = vmatpush2.msra.mxu0 0.0
    %363 = vmatprep.subr.mxu0 0.0
    %364 = vmatpush2.msra.mxu0 0.0
    %365 = vmatprep.subr.mxu0 0.0
    %366 = vmatpush2.msra.mxu0 0.0
    %367 = vmatprep.subr.mxu0 0.0
    %368 = vmatpush2.msra.mxu0 0.0
    %369 = vmatprep.subr.mxu0 0.0
    %370 = vmatpush2.msra.mxu0 0.0
    %371 = vmatprep.subr.mxu0 0.0
    %372 = vmatpush2.msra.mxu0 0.0
    %373 = vmatprep.subr.mxu0 0.0
    %374 = vmatpush2.msra.mxu0 0.0
    %375 = vmatprep.subr.mxu0 0.0
    %376 = vmatpush2.msra.mxu0 0.0
    %377 = vmatprep.subr.mxu0 0.0
    %378 = vmatpush2.msra.mxu0 0.0
    %379 = vmatprep.subr.mxu0 0.0
    %380 = vmatpush2.msra.mxu0 0.0
    %381 = vmatprep.mubr.f32.mxu0 0.0
    %382 = vmatmul.mubr.f32.gmra.mxu0 %v315
    %v383 = vpop.f32.mrf.mxu0
    %v384 = vadd.f32 %v311, %v383
    %v385 = vpop.f32.mrf.mxu0
    %386 = vdwg.mxu0
    %387 = vst.msk [vmem:[#allocation2] sm:$0xff] %vm313, %v384
    // Predicated region
    $region38: #{tpu_custom_call.1} parent=1 // pred_check
      _
    $region39: #{tpu_custom_call.1} parent=1 // pred_check_branch
      %389 = sbr.rel (0) target = $region41
    $region40: #{tpu_custom_call.1} parent=1 // pred_region
      %s391 = ssub.s32 128, 128
      %392 = vsyncadd [#allocation3], %s391
      %s394 = sshll.u32 [#allocation2], 4
      %s395 = int_to_ptr.vmem [resolvable:$true] %s394
      %397 = dma.vmem_to_hbm [thread:$0]  %s395, 128, %s9, [#allocation3]
    $region41: #{tpu_custom_call.1} parent=1 // pred_fallthru
      _
    // Predicated region
    $region42: #{tpu_custom_call.1} parent=1 // pred_check
      _
    $region43: #{tpu_custom_call.1} parent=1 // pred_check_branch
      %399 = sbr.rel (0) target = $region45
    $region44: #{tpu_custom_call.1} parent=1 // pred_region
      %400 = dma.done [#allocation3], 128
    $region45: #{tpu_custom_call.1} parent=1 // pred_fallthru
      _
    %401 = vsyncpa [#allocation3], 1

</llo_original>
